<compile_context>
chip_gen: v5e
topology: v5e:2x2
jax: 0.10.0
libtpu: 0.0.40
codegen_flags: <defaults>
</compile_context>

<pallas_src>
import functools

import jax
import jax.numpy as jnp
from jax import lax
from jax.experimental import pallas as pl
from jax.experimental.pallas import tpu as pltpu

_LANE = 128
_SUBLANE = 8
_NUM_CORES = 2      # leading "parallel" grid axis (megacore split on v7x/v5p/v4)
_CHUNK_ROWS = 64    # in-kernel accumulation chunk (rows of 128 lanes)


def _max_tile_rows() -> int:
    """Per-generation DMA tile height (rows of 128 lanes per grid step)."""
    try:
        kind = jax.devices()[0].device_kind.lower()
    except Exception:
        return 1024
    # v6e / v7x: 32 MiB default scoped VMEM -> 2048-row tiles (<= 8 MiB buffered).
    if ("v6" in kind) or ("v7" in kind) or ("7x" in kind):
        return 2048
    # v5e (16 MiB default scoped VMEM) and older / unknown parts: 1024 rows
    # (<= 4 MiB double-buffered at nc=2) is already >10x the per-step overhead.
    return 1024


def _cmse_kernel(p_ref, t_ref, out_ref, *, nc: int, chunk_rows: int):
    """Accumulate folded re/im sums of (pred - target)^2 over one (nc, T, 128) tile.

    p_ref/t_ref: (nc, T, 128) tiles (f32, or bf16 upcast per-vreg in-kernel).
    out_ref:     (1, nc, 8, 128) f32 per-core partial-sum slab; its block index is
                 constant across the inner ("arbitrary") axis so it stays resident
                 in VMEM and is accumulated into directly (no scratch needed).
    Folded values: component 0 = sum(dre^2 - dim^2)   (true Re of d^2),
                   component 1 = sum(dre * dim)        (HALF the Im of d^2; the 0.5
                   loss scale makes it exact in the wrapper).
    """
    i = pl.program_id(1)

    @pl.when(i == 0)
    def _init():
        out_ref[...] = jnp.zeros_like(out_ref)

    tile_rows = p_ref.shape[1]

    def accum(row0, nrows):
        dre = (p_ref[0, pl.ds(row0, nrows), :].astype(jnp.float32)
               - t_ref[0, pl.ds(row0, nrows), :].astype(jnp.float32))
        if nc == 2:
            dim = (p_ref[1, pl.ds(row0, nrows), :].astype(jnp.float32)
                   - t_ref[1, pl.ds(row0, nrows), :].astype(jnp.float32))
            sq_re = dre * dre - dim * dim
            sq_im = dre * dim
        else:
            sq_re = dre * dre
            sq_im = None
        # Sublane-grouped partial reduction: (nrows,128)->(nrows/8,8,128)->(8,128).
        # Pure vreg-wise VPU adds; no cross-lane XLU work in the hot loop.
        out_ref[0, 0, :, :] += sq_re.reshape(
            nrows // _SUBLANE, _SUBLANE, _LANE).sum(axis=0)
        if sq_im is not None:
            out_ref[0, 1, :, :] += sq_im.reshape(
                nrows // _SUBLANE, _SUBLANE, _LANE).sum(axis=0)

    # Chunked accumulation keeps live ranges to a handful of vregs even for
    # 2048-row tiles (a full-tile intermediate would be 256+ vregs -> spills).
    n_full = tile_rows // chunk_rows
    rem = tile_rows - n_full * chunk_rows

    if n_full > 0:
        def body(k, carry):
            accum(pl.multiple_of(k * chunk_rows, chunk_rows), chunk_rows)
            return carry
        lax.fori_loop(0, n_full, body, 0, unroll=True)
    if rem > 0:                      # static remainder chunk (multiple of 8/16)
        accum(n_full * chunk_rows, rem)


@jax.jit
def complex_mse_loss(pred: jax.Array, target: jax.Array) -> jax.Array:
    """Pallas implementation of ComplexMSELoss.forward -> complex64 scalar."""
    pred = jnp.asarray(pred)
    target = jnp.asarray(target)
    assert pred.shape == target.shape, (pred.shape, target.shape)

    has_imag = (jnp.issubdtype(pred.dtype, jnp.complexfloating)
                or jnp.issubdtype(target.dtype, jnp.complexfloating))
    nc = 2 if has_imag else 1
    n = int(pred.size)
    if n == 0:
        return jnp.asarray(complex("nan"), dtype=jnp.complex64)

    # Element dtype fed to the kernel: real bf16 stays bf16 (halves HBM reads,
    # upcast per-vreg in-kernel); everything else goes through f32 planes.
    # TODO(synk): complex128 inputs are squared in f32 re/im planes here, whereas
    # PyTorch does the elementwise part in complex128 before the complex64 mean.
    if has_imag:
        in_dtype = jnp.float32
    elif pred.dtype == jnp.bfloat16 and target.dtype == jnp.bfloat16:
        in_dtype = jnp.bfloat16
    else:
        in_dtype = jnp.float32
    sub_mult = 16 if jnp.dtype(in_dtype).itemsize == 2 else _SUBLANE

    p_flat = pred.reshape(-1)
    t_flat = target.reshape(-1)

    rows_total = n // _LANE
    max_tile = _max_tile_rows()

    if rows_total < _NUM_CORES * sub_mult:
        # Tiny input: not worth a kernel launch; single fused XLA pass below.
        n_kernel = nbt = steps = tile_rows = 0
    else:
        # Adaptive tiling with EXACT coverage (no pad, no OOB reads, no masking):
        # nbt = NUM_CORES*steps equal blocks of tile_rows rows cover
        # nbt*tile_rows*128 <= n elements; the leftover goes to the JAX tail.
        nbt = _NUM_CORES * max(1, pl.cdiv(rows_total, _NUM_CORES * max_tile))
        tile_rows = (rows_total // nbt) // sub_mult * sub_mult
        steps = nbt // _NUM_CORES
        n_kernel = nbt * tile_rows * _LANE

    re_sum = jnp.float32(0.0)
    im_sum = jnp.float32(0.0)

    if n_kernel > 0:
        rows_k = nbt * tile_rows

        def to_planes(x):
            xk = x if n_kernel == n else x[:n_kernel]
            if has_imag:
                xc = xk.astype(jnp.complex64)
                # One producer fusion: read complex, write lane-dense
                # (2, rows, 128) f32 planes.  Unavoidable pass: Mosaic has no
                # complex dtype and JAX has no zero-copy complex->f32 bitcast.
                return jnp.stack([jnp.real(xc), jnp.imag(xc)], axis=0).reshape(
                    nc, rows_k, _LANE)
            # Real fast path: plain reshape (zero-copy for aligned sizes/layouts).
            return xk.astype(in_dtype).reshape(nc, rows_k, _LANE)

        p_planes = to_planes(p_flat)
        t_planes = to_planes(t_flat)

        in_spec = pl.BlockSpec((nc, tile_rows, _LANE),
                               lambda c, i: (0, c * steps + i, 0))
        out_spec = pl.BlockSpec((1, nc, _SUBLANE, _LANE),
                                lambda c, i: (c, 0, 0, 0))

        itemsize = jnp.dtype(in_dtype).itemsize
        cost = pl.CostEstimate(
            flops=(8 if nc == 2 else 3) * n_kernel,
            transcendentals=0,
            bytes_accessed=2 * nc * n_kernel * itemsize
                           + _NUM_CORES * nc * _SUBLANE * _LANE * 4)

        partial_sums = pl.pallas_call(
            functools.partial(_cmse_kernel, nc=nc, chunk_rows=_CHUNK_ROWS),
            out_shape=jax.ShapeDtypeStruct(
                (_NUM_CORES, nc, _SUBLANE, _LANE), jnp.float32),
            grid_spec=pltpu.PrefetchScalarGridSpec(
                num_scalar_prefetch=0,
                grid=(_NUM_CORES, steps),
                in_specs=[in_spec, in_spec],
                out_specs=out_spec,
            ),
            compiler_params=pltpu.CompilerParams(
                dimension_semantics=("parallel", "arbitrary")),
            cost_estimate=cost,
        )(p_planes, t_planes)

        sums = jnp.sum(partial_sums, axis=(0, 2, 3))       # (nc,) tiny reduce
        re_sum = re_sum + sums[0]
        if nc == 2:
            im_sum = im_sum + sums[1]

    if n_kernel < n:
        # Ragged tail: one tiny fused XLA pass over the ORIGINAL arrays
        # (typically 0 elements; worst case < ~1% of the data).
        pt, tt = p_flat[n_kernel:], t_flat[n_kernel:]
        if has_imag:
            d = pt.astype(jnp.complex64) - tt.astype(jnp.complex64)
            dre, dim = jnp.real(d), jnp.imag(d)
            re_sum = re_sum + jnp.sum(dre * dre - dim * dim)
            im_sum = im_sum + jnp.sum(dre * dim)
        else:
            d = pt.astype(jnp.float32) - tt.astype(jnp.float32)
            re_sum = re_sum + jnp.sum(d * d)

    inv_n = jnp.float32(1.0 / n)
    loss_re = 0.5 * re_sum * inv_n
    loss_im = im_sum * inv_n          # folded: 0.5 * sum(2*a*b) == sum(a*b)
    return lax.complex(loss_re, loss_im).astype(jnp.complex64)


if __name__ == "__main__":
    key = jax.random.PRNGKey(0)
    k1, k2, k3, k4 = jax.random.split(key, 4)

    # Complex64 inputs (the primary use case).  Loss is layout-agnostic (full mean).
    shape = (2, 4, 16, 16)
    pred = (jax.random.normal(k1, shape, dtype=jnp.float32)
            + 1j * jax.random.normal(k2, shape, dtype=jnp.float32)).astype(jnp.complex64)
    target = (jax.random.normal(k3, shape, dtype=jnp.float32)
              + 1j * jax.random.normal(k4, shape, dtype=jnp.float32)).astype(jnp.complex64)

    loss = jax.block_until_ready(complex_mse_loss(pred, target))
    ref = jnp.mean(0.5 * (pred - target) ** 2).astype(jnp.complex64)
    assert jnp.allclose(loss, ref, rtol=1e-5, atol=1e-6), (loss, ref)

    # Real f32 fast path (imag of the loss is exactly zero).
    rp = jax.random.normal(k1, shape, dtype=jnp.float32)
    rt = jax.random.normal(k3, shape, dtype=jnp.float32)
    loss_r = jax.block_until_ready(complex_mse_loss(rp, rt))
    ref_r = jnp.mean(0.5 * (rp - rt) ** 2).astype(jnp.complex64)
    assert jnp.allclose(loss_r, ref_r, rtol=1e-5, atol=1e-6), (loss_r, ref_r)

    # Real bf16 native path (kernel reads bf16, upcasts per-vreg).
    bshape = (2, 4, 32, 32)
    bp = jax.random.normal(k1, bshape, dtype=jnp.bfloat16)
    bt = jax.random.normal(k3, bshape, dtype=jnp.bfloat16)
    loss_b = jax.block_until_ready(complex_mse_loss(bp, bt))
    ref_b = jnp.mean(0.5 * (bp.astype(jnp.float32)
                            - bt.astype(jnp.float32)) ** 2).astype(jnp.complex64)
    assert jnp.allclose(loss_b, ref_b, rtol=1e-4, atol=1e-5), (loss_b, ref_b)

    print("KERNEL_OK")
</pallas_src>

<mosaic_0001>
module attributes {stable_mosaic.version = 11 : i64} {
  func.func @_cmse_kernel(%arg0: i32, %arg1: i32, %arg2: memref<2x8x128xf32, #tpu.memory_space<vmem>>, %arg3: memref<2x8x128xf32, #tpu.memory_space<vmem>>, %arg4: memref<1x2x8x128xf32, #tpu.memory_space<vmem>>) attributes {dimension_semantics = [#tpu.dimension_semantics<parallel>, #tpu.dimension_semantics<arbitrary>], iteration_bounds = array<i64: 2, 1>, scalar_prefetch = 0 : i64, scratch_operands = 0 : i64, tpu.core_type = #tpu.core_type<tc>, window_params = [{transform_indices = @transform_0, window_bounds = array<i64: 2, 8, 128>}, {transform_indices = @transform_1, window_bounds = array<i64: 2, 8, 128>}, {transform_indices = @transform_2, window_bounds = array<i64: 1, 2, 8, 128>}]} {
    %c0_i32 = arith.constant 0 : i32
    %0 = arith.cmpi eq, %arg1, %c0_i32 : i32
    %1 = arith.extui %0 : i1 to i32
    %c0_i32_0 = arith.constant 0 : i32
    %2 = arith.cmpi ne, %1, %c0_i32_0 : i32
    scf.if %2 {
      %cst_28 = arith.constant 0.000000e+00 : f32
      %33 = vector.broadcast %cst_28 : f32 to vector<1x2x8x128xf32>
      %c0_29 = arith.constant 0 : index
      %c0_30 = arith.constant 0 : index
      %c0_31 = arith.constant 0 : index
      %c0_32 = arith.constant 0 : index
      %34 = vector.load %arg4[%c0_29, %c0_30, %c0_31, %c0_32] : memref<1x2x8x128xf32, #tpu.memory_space<vmem>>, vector<1x2x8x128xf32>
      tpu.vector_store %arg4[%c0_29, %c0_30, %c0_31, %c0_32], %33 {strides = array<i32>} : memref<1x2x8x128xf32, #tpu.memory_space<vmem>>, vector<1x2x8x128xf32>,
    } else {
    }
    %c0 = arith.constant 0 : index
    %c0_1 = arith.constant 0 : index
    %c0_2 = arith.constant 0 : index
    %3 = vector.load %arg2[%c0, %c0_1, %c0_2] : memref<2x8x128xf32, #tpu.memory_space<vmem>>, vector<1x8x128xf32>
    %4 = vector.shape_cast %3 : vector<1x8x128xf32> to vector<8x128xf32>
    %c0_3 = arith.constant 0 : index
    %c0_4 = arith.constant 0 : index
    %c0_5 = arith.constant 0 : index
    %5 = vector.load %arg3[%c0_3, %c0_4, %c0_5] : memref<2x8x128xf32, #tpu.memory_space<vmem>>, vector<1x8x128xf32>
    %6 = vector.shape_cast %5 : vector<1x8x128xf32> to vector<8x128xf32>
    %7 = arith.subf %4, %6 : vector<8x128xf32>
    %c1 = arith.constant 1 : index
    %c0_6 = arith.constant 0 : index
    %c0_7 = arith.constant 0 : index
    %8 = vector.load %arg2[%c1, %c0_6, %c0_7] : memref<2x8x128xf32, #tpu.memory_space<vmem>>, vector<1x8x128xf32>
    %9 = vector.shape_cast %8 : vector<1x8x128xf32> to vector<8x128xf32>
    %c1_8 = arith.constant 1 : index
    %c0_9 = arith.constant 0 : index
    %c0_10 = arith.constant 0 : index
    %10 = vector.load %arg3[%c1_8, %c0_9, %c0_10] : memref<2x8x128xf32, #tpu.memory_space<vmem>>, vector<1x8x128xf32>
    %11 = vector.shape_cast %10 : vector<1x8x128xf32> to vector<8x128xf32>
    %12 = arith.subf %9, %11 : vector<8x128xf32>
    %13 = arith.mulf %7, %7 : vector<8x128xf32>
    %14 = arith.mulf %12, %12 : vector<8x128xf32>
    %15 = arith.subf %13, %14 : vector<8x128xf32>
    %16 = arith.mulf %7, %12 : vector<8x128xf32>
    %c0_11 = arith.constant 0 : index
    %c0_12 = arith.constant 0 : index
    %c0_13 = arith.constant 0 : index
    %c0_14 = arith.constant 0 : index
    %17 = vector.load %arg4[%c0_11, %c0_12, %c0_13, %c0_14] : memref<1x2x8x128xf32, #tpu.memory_space<vmem>>, vector<1x1x8x128xf32>
    %18 = vector.shape_cast %17 : vector<1x1x8x128xf32> to vector<8x128xf32>
    %19 = vector.shape_cast %15 : vector<8x128xf32> to vector<1x8x128xf32>
    %cst = arith.constant dense<0.000000e+00> : vector<8x128xf32>
    %20 = vector.multi_reduction <add>, %19, %cst [0] : vector<1x8x128xf32> to vector<8x128xf32>
    %21 = arith.addf %18, %20 : vector<8x128xf32>
    %c0_15 = arith.constant 0 : index
    %c0_16 = arith.constant 0 : index
    %c0_17 = arith.constant 0 : index
    %c0_18 = arith.constant 0 : index
    %22 = vector.load %arg4[%c0_15, %c0_16, %c0_17, %c0_18] : memref<1x2x8x128xf32, #tpu.memory_space<vmem>>, vector<1x1x8x128xf32>
    %23 = vector.shape_cast %22 : vector<1x1x8x128xf32> to vector<8x128xf32>
    %24 = vector.shape_cast %21 : vector<8x128xf32> to vector<1x1x8x128xf32>
    tpu.vector_store %arg4[%c0_15, %c0_16, %c0_17, %c0_18], %24 {strides = array<i32>} : memref<1x2x8x128xf32, #tpu.memory_space<vmem>>, vector<1x1x8x128xf32>,
    %c0_19 = arith.constant 0 : index
    %c1_20 = arith.constant 1 : index
    %c0_21 = arith.constant 0 : index
    %c0_22 = arith.constant 0 : index
    %25 = vector.load %arg4[%c0_19, %c1_20, %c0_21, %c0_22] : memref<1x2x8x128xf32, #tpu.memory_space<vmem>>, vector<1x1x8x128xf32>
    %26 = vector.shape_cast %25 : vector<1x1x8x128xf32> to vector<8x128xf32>
    %27 = vector.shape_cast %16 : vector<8x128xf32> to vector<1x8x128xf32>
    %cst_23 = arith.constant dense<0.000000e+00> : vector<8x128xf32>
    %28 = vector.multi_reduction <add>, %27, %cst_23 [0] : vector<1x8x128xf32> to vector<8x128xf32>
    %29 = arith.addf %26, %28 : vector<8x128xf32>
    %c0_24 = arith.constant 0 : index
    %c1_25 = arith.constant 1 : index
    %c0_26 = arith.constant 0 : index
    %c0_27 = arith.constant 0 : index
    %30 = vector.load %arg4[%c0_24, %c1_25, %c0_26, %c0_27] : memref<1x2x8x128xf32, #tpu.memory_space<vmem>>, vector<1x1x8x128xf32>
    %31 = vector.shape_cast %30 : vector<1x1x8x128xf32> to vector<8x128xf32>
    %32 = vector.shape_cast %29 : vector<8x128xf32> to vector<1x1x8x128xf32>
    tpu.vector_store %arg4[%c0_24, %c1_25, %c0_26, %c0_27], %32 {strides = array<i32>} : memref<1x2x8x128xf32, #tpu.memory_space<vmem>>, vector<1x1x8x128xf32>,
    return
  }
  func.func @transform_0(%arg0: i32, %arg1: i32) -> (i32, i32, i32) {
    %c1_i32 = arith.constant 1 : i32
    %0 = arith.muli %arg0, %c1_i32 : i32
    %1 = arith.addi %0, %arg1 : i32
    %c0_i32 = arith.constant 0 : i32
    %c0_i32_0 = arith.constant 0 : i32
    %c0_i32_1 = arith.constant 0 : i32
    return %c0_i32, %1, %c0_i32_0 : i32, i32, i32
  }
  func.func @transform_1(%arg0: i32, %arg1: i32) -> (i32, i32, i32) {
    %c1_i32 = arith.constant 1 : i32
    %0 = arith.muli %arg0, %c1_i32 : i32
    %1 = arith.addi %0, %arg1 : i32
    %c0_i32 = arith.constant 0 : i32
    %c0_i32_0 = arith.constant 0 : i32
    %c0_i32_1 = arith.constant 0 : i32
    return %c0_i32, %1, %c0_i32_0 : i32, i32, i32
  }
  func.func @transform_2(%arg0: i32, %arg1: i32) -> (i32, i32, i32, i32) {
    %c0_i32 = arith.constant 0 : i32
    %c0_i32_0 = arith.constant 0 : i32
    %c0_i32_1 = arith.constant 0 : i32
    %c0_i32_2 = arith.constant 0 : i32
    return %arg0, %c0_i32, %c0_i32_0, %c0_i32_1 : i32, i32, i32, i32
  }
}

</mosaic_0001>

<llo_original>
// kernel: custom-call.1
$region0: #{custom-call.1}
  %s0 = inlined_call_operand.hbm [shape: c64[2,4,16,16], index: 0, kind: input, shape index: {}]
  %s1 = inlined_call_operand.vmem [shape: f32[2,4,16,16], index: 1, kind: output, shape index: {}]
  %s2 = scalar_lea.hbm %s0, 128
  $region1: #{custom-call.1} parent=0
    #allocation0 [shape = 's32[1]{0}', space=sflag, size = 0x4, scoped, tag = 'scoped memory for custom-call.1']
    %3 = vsyncpa [#allocation0], 0
    %s5 = sshll.u32 %s2, 4
    %s6 = int_to_ptr.hbm [resolvable:$true] %s5
    %s7 = sshll.u32 %s1, 4
    %s8 = int_to_ptr.vmem [resolvable:$true] %s7
    %10 = dma.hbm_to_vmem [thread:$0]  %s6, 2048, %s8, [#allocation0]
    %12 = dma.done [#allocation0], 2048
    %13 = vsyncpa [#allocation0], 1

// kernel: custom-call
$region0: #{custom-call}
  %s0 = inlined_call_operand.hbm [shape: c64[2,4,16,16], index: 0, kind: input, shape index: {}]
  %s1 = inlined_call_operand.vmem [shape: f32[2,4,16,16], index: 1, kind: output, shape index: {}]
  $region1: #{custom-call} parent=0
    #allocation0 [shape = 's32[1]{0}', space=sflag, size = 0x4, scoped, tag = 'scoped memory for custom-call']
    %2 = vsyncpa [#allocation0], 0
    %s4 = sshll.u32 %s0, 4
    %s5 = int_to_ptr.hbm [resolvable:$true] %s4
    %s6 = sshll.u32 %s1, 4
    %s7 = int_to_ptr.vmem [resolvable:$true] %s6
    %9 = dma.hbm_to_vmem [thread:$0]  %s5, 2048, %s7, [#allocation0]
    %11 = dma.done [#allocation0], 2048
    %12 = vsyncpa [#allocation0], 1

// kernel: custom-call.4
$region0: #{custom-call.4}
  #allocation0 [shape = 'u32[8,128]{1,0}', space=vmem, size = 0x1000, scoped, tag = 'scoped memory for custom-call.4']
  #allocation2 [shape = 'u32[8,128]{1,0}', space=vmem, size = 0x1000, scoped, tag = 'scoped memory for custom-call.4']
  %s0 = inlined_call_operand.<no memory space> [shape: f32[], index: 0, kind: input, shape index: {}]
  %s1 = inlined_call_operand.<no memory space> [shape: f32[], index: 1, kind: input, shape index: {}]
  %s2 = inlined_call_operand.hbm [shape: c64[], index: 2, kind: output, shape index: {}]
  %s3 = scalar_lea.hbm %s2, 1
  %v4 = vstv %s0
  %vm5 = vcmask 1040384
  %6 = vst.msk [vmem:[#allocation0] sm:$0xff] %vm5, %v4
  $region1: #{custom-call.4} parent=0
    #allocation1 [shape = 's32[1]{0}', space=sflag, size = 0x4, scoped, tag = 'scoped memory for custom-call.4']
    %7 = vsyncpa [#allocation1], 0
    %s9 = sshll.u32 [#allocation0], 4
    %s10 = int_to_ptr.vmem [resolvable:$true] %s9
    %s11 = sshll.u32 %s2, 4
    %s12 = int_to_ptr.hbm [resolvable:$true] %s11
    %14 = dma.vmem_to_hbm [thread:$0]  %s10, 16, %s12, [#allocation1]
    %16 = dma.done [#allocation1], 16
    %17 = vsyncpa [#allocation1], 1
  %v18 = vstv %s1
  %vm19 = vcmask 1040384
  %20 = vst.msk [vmem:[#allocation2] sm:$0xff] %vm19, %v18
  $region2: #{custom-call.4} parent=0
    #allocation3 [shape = 's32[1]{0}', space=sflag, size = 0x4, scoped, tag = 'scoped memory for custom-call.4']
    %21 = vsyncpa [#allocation3], 0
    %s23 = sshll.u32 [#allocation2], 4
    %s24 = int_to_ptr.vmem [resolvable:$true] %s23
    %s25 = sshll.u32 %s3, 4
    %s26 = int_to_ptr.hbm [resolvable:$true] %s25
    %28 = dma.vmem_to_hbm [thread:$0]  %s24, 16, %s26, [#allocation3]
    %30 = dma.done [#allocation3], 16
    %31 = vsyncpa [#allocation3], 1

// kernel: complex_mse_loss.1
$region0: #{complex_mse_loss.1}
  #allocation0 [shape = 'u32[]', space=smem, size = 0x4, offset = 0x4, fixed_abs, tag = 'smem constant byte address 0x4 - core index']
  #allocation1 [shape = 'u32[72,128]{1,0:T(1,128)}', space=vmem, size = 0x9000, scoped, tag = 'internal scratch']
  %s0 = inlined_call_operand.vmem [shape: f32[2,16,128], index: 0, kind: input, shape index: {}]
  %s1 = inlined_call_operand.vmem [shape: f32[2,16,128], index: 1, kind: input, shape index: {}]
  %s2 = inlined_call_operand.vmem [shape: f32[2,2,8,128], index: 2, kind: output, shape index: {}]
  %s3 = sld [smem:[#allocation0]]
  $region121: #{complex_mse_loss.1} parent=0
    _
  %s5 = ssub.s32 1, %s3
  %s6 = scalar_select 0, %s5, %s3
  $region1: #{complex_mse_loss.1} parent=0
    #allocation2 [shape = 'u8[16384]{0}', space=vmem, size = 0x4000, scoped, tag = 'input window, operand 0']
    #allocation3 [shape = 'u8[16384]{0}', space=vmem, size = 0x4000, scoped, tag = 'input window, operand 1']
    loop: start=0, step=1, limit=4
    $region2: #{complex_mse_loss.1} parent=1 // loop_pre_header
      _
    $region3: #{complex_mse_loss.1} parent=1 // loop_header
      %s8 = sphi 0, %s12
      %p9 = scmp.ge.s32.totalorder %s8, 4
      %s15 = sphi 0, %s27
      %s16 = sphi 0, %s23
      %s17 = sphi 0, %s15
      %s18 = sphi 0, %s16
      %s19 = sphi 0, %s17
      %s20 = sphi 0, %s18
      %s32 = sphi 0, %s34
      %s35 = sphi 0, %s32
      %s36 = sphi 0, %s35
      %s52 = sphi 0, %s36
      %s60 = sphi 0, %s62
      %s63 = sphi 0, %s60
      %s64 = sphi 0, %s63
      %s80 = sphi 0, %s64
      %s86 = sphi 0, %s88
      %s89 = sphi 0, %s86
      %s90 = sphi 0, %s89
      %s106 = sphi 0, %s90
    $region4: #{complex_mse_loss.1} parent=1 // loop_header_branch
      %11 = sbr.rel (%p9) target = $region8
    $region5: #{complex_mse_loss.1} parent=1 // loop_body
      %s13 = ssub.s32 %s8, 1
      %s14 = ssub.s32 %s8, 2
      %s21 = sadd.s32 1, %s16
      %p22 = scmp.ge.s32.totalorder %s21, 1
      %s23 = scalar_select %p22, 0, %s21
      %s24 = sadd.s32 1, %s15
      %s25 = scalar_select %p22, %s24, %s15
      %p26 = scmp.ge.s32.totalorder %s25, 2
      %s27 = scalar_select %p26, 0, %s25
      %s28 = sadd.s32 %s15, %s16
      %s29 = sadd.s32 %s27, %s23
      %s30 = ssub.s32 %s28, %s29
      %p31 = scmp.eq.s32.totalorder %s30, 0
      %s33 = sadd.s32 %s32, 1
      %s34 = scalar_select %p31, %s32, %s33
      %p37 = pneg %p31
      %p38 = scmp.eq.s32.totalorder %s8, 1
      %p39 = por %p37, %p38
      %p40 = scmp.ne.s32.totalorder %s32, %s35
      %p41 = scmp.eq.s32.totalorder %s8, 0
      %p42 = por %p40, %p41
      %p43 = scmp.ne.s32.totalorder %s32, %s35
      %p44 = scmp.eq.s32.totalorder %s13, 1
      %p45 = por %p43, %p44
      %p46 = scmp.ne.s32.totalorder %s35, %s36
      %p47 = scmp.eq.s32.totalorder %s13, 0
      %p48 = por %p46, %p47
      %p49 = scmp.ne.s32.totalorder %s35, %s36
      %p50 = scmp.eq.s32.totalorder %s14, 1
      %p51 = por %p49, %p50
      %p53 = scmp.ne.s32.totalorder %s36, %s52
      %p54 = scmp.eq.s32.totalorder %s14, 0
      %p55 = por %p53, %p54
      %s56 = sadd.s32 %s15, %s16
      %s57 = sadd.s32 %s27, %s23
      %s58 = ssub.s32 %s56, %s57
      %p59 = scmp.eq.s32.totalorder %s58, 0
      %s61 = sadd.s32 %s60, 1
      %s62 = scalar_select %p59, %s60, %s61
      %p65 = pneg %p59
      %p66 = scmp.eq.s32.totalorder %s8, 1
      %p67 = por %p65, %p66
      %p68 = scmp.ne.s32.totalorder %s60, %s63
      %p69 = scmp.eq.s32.totalorder %s8, 0
      %p70 = por %p68, %p69
      %p71 = scmp.ne.s32.totalorder %s60, %s63
      %p72 = scmp.eq.s32.totalorder %s13, 1
      %p73 = por %p71, %p72
      %p74 = scmp.ne.s32.totalorder %s63, %s64
      %p75 = scmp.eq.s32.totalorder %s13, 0
      %p76 = por %p74, %p75
      %p77 = scmp.ne.s32.totalorder %s63, %s64
      %p78 = scmp.eq.s32.totalorder %s14, 1
      %p79 = por %p77, %p78
      %p81 = scmp.ne.s32.totalorder %s64, %s80
      %p82 = scmp.eq.s32.totalorder %s14, 0
      %p83 = por %p81, %p82
      %s84 = ssub.s32 %s15, %s27
      %p85 = scmp.eq.s32.totalorder %s84, 0
      %s87 = sadd.s32 %s86, 1
      %s88 = scalar_select %p85, %s86, %s87
      %p91 = pneg %p85
      %p92 = scmp.eq.s32.totalorder %s8, 1
      %p93 = por %p91, %p92
      %p94 = scmp.ne.s32.totalorder %s86, %s89
      %p95 = scmp.eq.s32.totalorder %s8, 0
      %p96 = por %p94, %p95
      %p97 = scmp.ne.s32.totalorder %s86, %s89
      %p98 = scmp.eq.s32.totalorder %s13, 1
      %p99 = por %p97, %p98
      %p100 = scmp.ne.s32.totalorder %s89, %s90
      %p101 = scmp.eq.s32.totalorder %s13, 0
      %p102 = por %p100, %p101
      %p103 = scmp.ne.s32.totalorder %s89, %s90
      %p104 = scmp.eq.s32.totalorder %s14, 1
      %p105 = por %p103, %p104
      %p107 = scmp.ne.s32.totalorder %s90, %s106
      %p108 = scmp.eq.s32.totalorder %s14, 0
      %p109 = por %p107, %p108
      %p110 = scmp.le.s32.totalorder 1, %s8
      %p111 = scmp.lt.s32.totalorder %s8, 3
      %p112 = pnand %p110, %p111
      %p113 = pneg %p112
      // Predicated region
      $region9: #{complex_mse_loss.1} parent=5 // pred_check
        _
      $region10: #{complex_mse_loss.1} parent=5 // pred_check_branch
        %115 = sbr.rel (%p112) target = $region12
      $region11: #{complex_mse_loss.1} parent=5 // pred_region
        %s116 = ssub.s32 %s8, 1
      $region12: #{complex_mse_loss.1} parent=5 // pred_fallthru
        _
      %p117 = scmp.lt.s32.totalorder %s8, 2
      // Predicated region
      $region13: #{complex_mse_loss.1} parent=5 // pred_check
        %p118 = pneg %p117
      $region14: #{complex_mse_loss.1} parent=5 // pred_check_branch
        %120 = sbr.rel (%p118) target = $region16
      $region15: #{complex_mse_loss.1} parent=5 // pred_region
        // Predicated region
        $region17: #{complex_mse_loss.1} parent=15 // pred_check
          %p121 = pneg %p42
        $region18: #{complex_mse_loss.1} parent=15 // pred_check_branch
          %123 = sbr.rel (%p121) target = $region20
        $region19: #{complex_mse_loss.1} parent=15 // pred_region
          %s124 = sand.u32 %s32, 1
          %s125 = sand.u32 %s32, 1
          %s126 = smul.addr %s125, 16
          %s127 = scalar_lea.vmem [#allocation2], %s126
          %s128 = sadd.s32 %s15, %s16
          %s129 = smul.addr %s128, 8
          %s130 = scalar_lea.vmem %s0, %s129
          // Predicated region
          $region21: #{complex_mse_loss.1} parent=19 // pred_check
            _
          $region22: #{complex_mse_loss.1} parent=19 // pred_check_branch
            %132 = sbr.rel (0) target = $region24
          $region23: #{complex_mse_loss.1} parent=19 // pred_region
            // Predicated region
            $region25: #{complex_mse_loss.1} parent=23 // pred_check
              _
            $region26: #{complex_mse_loss.1} parent=23 // pred_check_branch
              %134 = sbr.rel (0) target = $region28
            $region27: #{complex_mse_loss.1} parent=23 // pred_region
              // Predicated region
              $region40: #{complex_mse_loss.1} parent=27 // pred_check
                _
              $region41: #{complex_mse_loss.1} parent=27 // pred_check_branch
                %152 = sbr.rel (0) target = $region43
              $region42: #{complex_mse_loss.1} parent=27 // pred_region
                loop: start=0, step=1, limit=1
                $region44: #{complex_mse_loss.1} parent=42 // loop_pre_header
                  _
                $region45: #{complex_mse_loss.1} parent=42 // loop_header
                  %s154 = sphi 0, %s158
                  %p155 = scmp.ge.s32.totalorder %s154, 1
                  %s159 = sphi %s130, %s130
                  %s160 = sphi %s127, %s127
                $region46: #{complex_mse_loss.1} parent=42 // loop_header_branch
                  %157 = sbr.rel (%p155) target = $region50
                $region47: #{complex_mse_loss.1} parent=42 // loop_body
                  %v161 = vld [vmem:[%s159] sm:$0xff]
                  %162 = vst [vmem:[%s160] sm:$0xff] %v161
                  %v163 = vld [vmem:[%s159 + $0x10] sm:$0xff]
                  %164 = vst [vmem:[%s160 + $0x8] sm:$0xff] %v163
                $region48: #{complex_mse_loss.1} parent=42 // loop_footer
                  %s158 = sadd.s32 1, %s154
                $region49: #{complex_mse_loss.1} parent=42 // loop_footer_branch
                  %153 = sbr.rel target = $region45
                $region50: #{complex_mse_loss.1} parent=42 // loop_exit
                  _
              $region43: #{complex_mse_loss.1} parent=27 // pred_fallthru
                _
              // Predicated region
              $region51: #{complex_mse_loss.1} parent=27 // pred_check
                _
              $region52: #{complex_mse_loss.1} parent=27 // pred_check_branch
                %166 = sbr.rel target = $region54
              $region53: #{complex_mse_loss.1} parent=27 // pred_region
                _
              $region54: #{complex_mse_loss.1} parent=27 // pred_fallthru
                _
            $region28: #{complex_mse_loss.1} parent=23 // pred_fallthru
              _
            // Predicated region
            $region29: #{complex_mse_loss.1} parent=23 // pred_check
              _
            $region30: #{complex_mse_loss.1} parent=23 // pred_check_branch
              %136 = sbr.rel target = $region32
            $region31: #{complex_mse_loss.1} parent=23 // pred_region
              %s138 = ssub.s32 256, 1
              loop: start=0, step=1, limit=1
              $region33: #{complex_mse_loss.1} parent=31 // loop_pre_header
                _
              $region34: #{complex_mse_loss.1} parent=31 // loop_header
                %s140 = sphi 0, %s144
                %p141 = scmp.ge.s32.totalorder %s140, 1
                %s145 = sphi %s130, %s130
                %s146 = sphi %s127, %s127
              $region35: #{complex_mse_loss.1} parent=31 // loop_header_branch
                %143 = sbr.rel (%p141) target = $region39
              $region36: #{complex_mse_loss.1} parent=31 // loop_body
                %v147 = vld [vmem:[%s145] sm:%s138]
                %148 = vst [vmem:[%s146] sm:%s138] %v147
                %v149 = vld [vmem:[%s145 + $0x10] sm:%s138]
                %150 = vst [vmem:[%s146 + $0x8] sm:%s138] %v149
              $region37: #{complex_mse_loss.1} parent=31 // loop_footer
                %s144 = sadd.s32 1, %s140
              $region38: #{complex_mse_loss.1} parent=31 // loop_footer_branch
                %139 = sbr.rel target = $region34
              $region39: #{complex_mse_loss.1} parent=31 // loop_exit
                _
            $region32: #{complex_mse_loss.1} parent=23 // pred_fallthru
              _
          $region24: #{complex_mse_loss.1} parent=19 // pred_fallthru
            _
          %167 = vnop
        $region20: #{complex_mse_loss.1} parent=15 // pred_fallthru
          _
        // Predicated region
        $region55: #{complex_mse_loss.1} parent=15 // pred_check
          %p168 = pneg %p70
        $region56: #{complex_mse_loss.1} parent=15 // pred_check_branch
          %170 = sbr.rel (%p168) target = $region58
        $region57: #{complex_mse_loss.1} parent=15 // pred_region
          %s171 = sand.u32 %s60, 1
          %s172 = sand.u32 %s60, 1
          %s173 = smul.addr %s172, 16
          %s174 = scalar_lea.vmem [#allocation3], %s173
          %s175 = sadd.s32 %s15, %s16
          %s176 = smul.addr %s175, 8
          %s177 = scalar_lea.vmem %s1, %s176
          // Predicated region
          $region59: #{complex_mse_loss.1} parent=57 // pred_check
            _
          $region60: #{complex_mse_loss.1} parent=57 // pred_check_branch
            %179 = sbr.rel (0) target = $region62
          $region61: #{complex_mse_loss.1} parent=57 // pred_region
            // Predicated region
            $region63: #{complex_mse_loss.1} parent=61 // pred_check
              _
            $region64: #{complex_mse_loss.1} parent=61 // pred_check_branch
              %181 = sbr.rel (0) target = $region66
            $region65: #{complex_mse_loss.1} parent=61 // pred_region
              // Predicated region
              $region78: #{complex_mse_loss.1} parent=65 // pred_check
                _
              $region79: #{complex_mse_loss.1} parent=65 // pred_check_branch
                %199 = sbr.rel (0) target = $region81
              $region80: #{complex_mse_loss.1} parent=65 // pred_region
                loop: start=0, step=1, limit=1
                $region82: #{complex_mse_loss.1} parent=80 // loop_pre_header
                  _
                $region83: #{complex_mse_loss.1} parent=80 // loop_header
                  %s201 = sphi 0, %s205
                  %p202 = scmp.ge.s32.totalorder %s201, 1
                  %s206 = sphi %s177, %s177
                  %s207 = sphi %s174, %s174
                $region84: #{complex_mse_loss.1} parent=80 // loop_header_branch
                  %204 = sbr.rel (%p202) target = $region88
                $region85: #{complex_mse_loss.1} parent=80 // loop_body
                  %v208 = vld [vmem:[%s206] sm:$0xff]
                  %209 = vst [vmem:[%s207] sm:$0xff] %v208
                  %v210 = vld [vmem:[%s206 + $0x10] sm:$0xff]
                  %211 = vst [vmem:[%s207 + $0x8] sm:$0xff] %v210
                $region86: #{complex_mse_loss.1} parent=80 // loop_footer
                  %s205 = sadd.s32 1, %s201
                $region87: #{complex_mse_loss.1} parent=80 // loop_footer_branch
                  %200 = sbr.rel target = $region83
                $region88: #{complex_mse_loss.1} parent=80 // loop_exit
                  _
              $region81: #{complex_mse_loss.1} parent=65 // pred_fallthru
                _
              // Predicated region
              $region89: #{complex_mse_loss.1} parent=65 // pred_check
                _
              $region90: #{complex_mse_loss.1} parent=65 // pred_check_branch
                %213 = sbr.rel target = $region92
              $region91: #{complex_mse_loss.1} parent=65 // pred_region
                _
              $region92: #{complex_mse_loss.1} parent=65 // pred_fallthru
                _
            $region66: #{complex_mse_loss.1} parent=61 // pred_fallthru
              _
            // Predicated region
            $region67: #{complex_mse_loss.1} parent=61 // pred_check
              _
            $region68: #{complex_mse_loss.1} parent=61 // pred_check_branch
              %183 = sbr.rel target = $region70
            $region69: #{complex_mse_loss.1} parent=61 // pred_region
              %s185 = ssub.s32 256, 1
              loop: start=0, step=1, limit=1
              $region71: #{complex_mse_loss.1} parent=69 // loop_pre_header
                _
              $region72: #{complex_mse_loss.1} parent=69 // loop_header
                %s187 = sphi 0, %s191
                %p188 = scmp.ge.s32.totalorder %s187, 1
                %s192 = sphi %s177, %s177
                %s193 = sphi %s174, %s174
              $region73: #{complex_mse_loss.1} parent=69 // loop_header_branch
                %190 = sbr.rel (%p188) target = $region77
              $region74: #{complex_mse_loss.1} parent=69 // loop_body
                %v194 = vld [vmem:[%s192] sm:%s185]
                %195 = vst [vmem:[%s193] sm:%s185] %v194
                %v196 = vld [vmem:[%s192 + $0x10] sm:%s185]
                %197 = vst [vmem:[%s193 + $0x8] sm:%s185] %v196
              $region75: #{complex_mse_loss.1} parent=69 // loop_footer
                %s191 = sadd.s32 1, %s187
              $region76: #{complex_mse_loss.1} parent=69 // loop_footer_branch
                %186 = sbr.rel target = $region72
              $region77: #{complex_mse_loss.1} parent=69 // loop_exit
                _
            $region70: #{complex_mse_loss.1} parent=61 // pred_fallthru
              _
          $region62: #{complex_mse_loss.1} parent=57 // pred_fallthru
            _
          %214 = vnop
        $region58: #{complex_mse_loss.1} parent=15 // pred_fallthru
          _
      $region16: #{complex_mse_loss.1} parent=5 // pred_fallthru
        _
      %p215 = scmp.le.s32.totalorder 1, %s8
      %p216 = scmp.lt.s32.totalorder %s8, 3
      %p217 = pnand %p215, %p216
      %p218 = pneg %p217
      // Predicated region
      $region93: #{complex_mse_loss.1} parent=5 // pred_check
        _
      $region94: #{complex_mse_loss.1} parent=5 // pred_check_branch
        %220 = sbr.rel (%p217) target = $region96
      $region95: #{complex_mse_loss.1} parent=5 // pred_region
        %s221 = ssub.s32 %s8, 1
        %s222 = sand.u32 %s35, 1
        %s223 = sand.u32 %s35, 1
        %s224 = smul.addr %s223, 16
        %s225 = scalar_lea.vmem [#allocation2], %s224
        // Predicated region
        $region97: #{complex_mse_loss.1} parent=95 // pred_check
          %p226 = pneg %p48
        $region98: #{complex_mse_loss.1} parent=95 // pred_check_branch
          %228 = sbr.rel (%p226) target = $region100
        $region99: #{complex_mse_loss.1} parent=95 // pred_region
          _
        $region100: #{complex_mse_loss.1} parent=95 // pred_fallthru
          _
        %s229 = sand.u32 %s63, 1
        %s230 = sand.u32 %s63, 1
        %s231 = smul.addr %s230, 16
        %s232 = scalar_lea.vmem [#allocation3], %s231
        // Predicated region
        $region101: #{complex_mse_loss.1} parent=95 // pred_check
          %p233 = pneg %p76
        $region102: #{complex_mse_loss.1} parent=95 // pred_check_branch
          %235 = sbr.rel (%p233) target = $region104
        $region103: #{complex_mse_loss.1} parent=95 // pred_region
          _
        $region104: #{complex_mse_loss.1} parent=95 // pred_fallthru
          _
        %s236 = sand.u32 %s35, 1
        %s237 = sand.u32 %s35, 1
        %s238 = smul.addr %s237, 16
        %s239 = scalar_lea.vmem [#allocation2], %s238
        %p240 = pneg %p48
        %p241 = pneg %p45
        %s242 = sand.u32 %s63, 1
        %s243 = sand.u32 %s63, 1
        %s244 = smul.addr %s243, 16
        %s245 = scalar_lea.vmem [#allocation3], %s244
        %p246 = pneg %p76
        %p247 = pneg %p73
        %p248 = pneg %p102
        %p249 = pneg %p99
        %p250 = scmp.lt.s32.totalorder %s17, 1
        %s251 = scalar_select %p250, %s17, 1
        %s252 = smul.addr %s251, 2
        %s253 = smul.addr %s252, 8
        %s254 = scalar_lea.vmem %s2, %s253
        %s255 = sadd.s32 %s17, %s18
        %s256 = sadd.s32 %s17, %s18
        %p257 = scmp.lt.s32.totalorder %s17, 1
        %s258 = scalar_select %p257, %s17, 1
        %s259 = smul.addr %s258, 2
        %s260 = smul.addr %s259, 8
        %s261 = scalar_lea.vmem %s2, %s260
        %p262 = scmp.eq.s32.totalorder %s18, 0
        // Predicated region
        $region105: #{complex_mse_loss.1} parent=95 // pred_check
          %p263 = pneg %p262
        $region106: #{complex_mse_loss.1} parent=95 // pred_check_branch
          %265 = sbr.rel (%p263) target = $region108
        $region107: #{complex_mse_loss.1} parent=95 // pred_region
          %266 = vst [vmem:[%s261] sm:$0xff] 0.0
          %267 = vst [vmem:[%s261 + $0x8] sm:$0xff] 0.0
        $region108: #{complex_mse_loss.1} parent=95 // pred_fallthru
          _
        %v268 = vld [vmem:[%s225] sm:$0xff]
        %v269 = vld [vmem:[%s232] sm:$0xff]
        %v270 = vsub.f32 %v268, %v269
        %s271 = scalar_lea.vmem %s225, 8 [#allocation2]
        %v272 = vld [vmem:[%s271] sm:$0xff]
        %s273 = scalar_lea.vmem %s232, 8 [#allocation3]
        %v274 = vld [vmem:[%s273] sm:$0xff]
        %v275 = vsub.f32 %v272, %v274
        %v276 = vmul.f32 %v270, %v270
        %v277 = vmul.f32 %v275, %v275
        %v278 = vsub.f32 %v276, %v277
        %v279 = vmul.f32 %v270, %v275
        %v280 = vld [vmem:[%s261] sm:$0xff]
        %v281 = vadd.f32 %v278, 0.0
        %v282 = vadd.f32 %v280, %v281
        %283 = vst [vmem:[%s261] sm:$0xff] %v282
        %s284 = scalar_lea.vmem %s261, 8
        %v285 = vld [vmem:[%s284] sm:$0xff]
        %v286 = vadd.f32 %v279, 0.0
        %v287 = vadd.f32 %v285, %v286
        %288 = vst [vmem:[%s284] sm:$0xff] %v287
        %p289 = scmp.lt.s32.totalorder %s17, 1
        %s290 = scalar_select %p289, %s17, 1
        %s291 = smul.addr %s290, 2
        %s292 = smul.addr %s291, 8
        %s293 = scalar_lea.vmem %s2, %s292
        // Predicated region
        $region109: #{complex_mse_loss.1} parent=95 // pred_check
          %p294 = pneg %p99
        $region110: #{complex_mse_loss.1} parent=95 // pred_check_branch
          %296 = sbr.rel (%p294) target = $region112
        $region111: #{complex_mse_loss.1} parent=95 // pred_region
          _
        $region112: #{complex_mse_loss.1} parent=95 // pred_fallthru
          _
      $region96: #{complex_mse_loss.1} parent=5 // pred_fallthru
        _
      %p297 = scmp.le.s32.totalorder 2, %s8
      // Predicated region
      $region113: #{complex_mse_loss.1} parent=5 // pred_check
        %p298 = pneg %p297
      $region114: #{complex_mse_loss.1} parent=5 // pred_check_branch
        %300 = sbr.rel (%p298) target = $region116
      $region115: #{complex_mse_loss.1} parent=5 // pred_region
        %s301 = ssub.s32 %s8, 2
        // Predicated region
        $region117: #{complex_mse_loss.1} parent=115 // pred_check
          %p302 = pneg %p105
        $region118: #{complex_mse_loss.1} parent=115 // pred_check_branch
          %304 = sbr.rel (%p302) target = $region120
        $region119: #{complex_mse_loss.1} parent=115 // pred_region
          %p305 = scmp.lt.s32.totalorder %s19, 1
          %s306 = scalar_select %p305, %s19, 1
          %s307 = smul.addr %s306, 2
          %s308 = smul.addr %s307, 8
          %s309 = scalar_lea.vmem %s2, %s308
        $region120: #{complex_mse_loss.1} parent=115 // pred_fallthru
          _
      $region116: #{complex_mse_loss.1} parent=5 // pred_fallthru
        _
    $region6: #{complex_mse_loss.1} parent=1 // loop_footer
      %s12 = sadd.s32 1, %s8
    $region7: #{complex_mse_loss.1} parent=1 // loop_footer_branch
      %7 = sbr.rel target = $region3
    $region8: #{complex_mse_loss.1} parent=1 // loop_exit
      _

</llo_original>
